<compile_context>
chip_gen: v7x
topology: tpu7x:2x2x1
jax: 0.10.0
libtpu: 0.0.40
codegen_flags: <defaults>
</compile_context>

<pallas_src>
import functools

import jax
import jax.numpy as jnp
from jax import lax
from jax.experimental import pallas as pl
from jax.experimental.pallas import tpu as pltpu


def _cam_kernel(gamma_ref, x_ref, o_ref, acc_ref, attn_g_ref, *cache,
                c_actual, cache_x):
    ph = pl.program_id(1)
    j = pl.program_id(2)
    n_tiles = pl.num_programs(2)
    xcache_ref = cache[0] if cache_x else None

    # ---------------- phase 0: Gram matrix + dim=1 softmax ---------------------
    @pl.when(ph == 0)
    def _build_attention():
        @pl.when(j == 0)
        def _init():
            acc_ref[...] = jnp.zeros_like(acc_ref)

        xb = x_ref[0].astype(jnp.bfloat16)                       # (C_pad, tN)
        # attn += x_tile @ x_tile^T — contract over N on both operands.
        # (Gram matrix is symmetric; one transposed MXU operand is unavoidable
        #  and hidden behind the HBM stream in the mem-bound regime.)
        acc_ref[...] += lax.dot_general(
            xb, xb,
            dimension_numbers=(((1,), (1,)), ((), ())),
            preferred_element_type=jnp.float32)

        if cache_x:
            # Stash the bf16 tile so phase 1 never re-reads x from HBM.
            xcache_ref[j] = xb

        @pl.when(j == n_tiles - 1)
        def _softmax():
            attn = acc_ref[...]                                  # (C_pad, C_pad) f32
            c_pad = attn.shape[0]
            row_max = jnp.max(attn, axis=-1, keepdims=True)      # torch max(-1, keepdim)
            energy = row_max - attn
            if c_pad > c_actual:
                # zero-padded channel rows must not pollute the dim=1 softmax
                row_ids = lax.broadcasted_iota(jnp.int32, (c_pad, c_pad), 0)
                energy = jnp.where(row_ids < c_actual, energy, jnp.float32(-1e30))
            col_max = jnp.max(energy, axis=0, keepdims=True)     # torch Softmax(dim=1)
            p = jnp.exp(energy - col_max)
            denom = jnp.sum(p, axis=0, keepdims=True)
            attn_sm = p / denom          # exact divide: C*C once per batch, negligible
            # Fold gamma into the cached attention (saves one (C_pad, tN) VPU
            # multiply per phase-1 tile per batch).
            attn_g_ref[...] = (attn_sm * gamma_ref[0]).astype(jnp.bfloat16)

    # ---------------- phase 1: out = (gamma*attn_sm) @ x + x -------------------
    @pl.when(ph == 1)
    def _apply_attention():
        if cache_x:
            xb = xcache_ref[j]                                   # (C_pad, tN) bf16
        else:
            xb = x_ref[0].astype(jnp.bfloat16)
        out = jnp.dot(attn_g_ref[...], xb, preferred_element_type=jnp.float32)
        o_ref[0] = (out + xb).astype(o_ref.dtype)                # bf16-sourced residual


def cam_forward(x, gamma, *, n_tile=1024, vmem_budget_bytes=40 * 2**20,
                cache_x=None):
    """x: (B, C, N), gamma: (1,) float32 -> (B, C, N) in x.dtype."""
    B, C, N = x.shape
    itemsize = x.dtype.itemsize

    C_pad = pl.cdiv(C, 16) * 16                     # bf16 sublane packing (>= 8)
    n_lanes = pl.cdiv(N, 128) * 128                 # lane-dense last dim
    tN = min(pl.cdiv(n_tile, 128) * 128, n_lanes)

    def footprint(t, with_cache):
        ntiles = pl.cdiv(n_lanes, t)
        blocks = 2 * C_pad * t * itemsize * 2       # double-buffered x-in + out blocks
        attn = C_pad * C_pad * (4 + 2)              # f32 accumulator + bf16 attn cache
        xcache = ntiles * C_pad * t * 2 if with_cache else 0
        return blocks + attn + xcache

    # Shrink the N tile until the streaming (no-cache) footprint fits the budget.
    while tN > 128 and footprint(tN, False) > vmem_budget_bytes:
        tN -= 128

    N_pad = pl.cdiv(N, tN) * tN
    n_tiles = N_pad // tN

    if cache_x is None:
        # Cache the whole (bf16) batch-slice of x in VMEM when it fits: removes
        # the entire second HBM read pass of x.
        cache_x = footprint(tN, True) <= vmem_budget_bytes

    fp = footprint(tN, cache_x)
    vmem_limit = max(int(1.3 * fp), vmem_budget_bytes, 16 * 2**20)

    xp = x
    if (C_pad, N_pad) != (C, N):
        xp = jnp.pad(x, ((0, 0), (0, C_pad - C), (0, N_pad - N)))

    if cache_x:
        # Phase 1 parks the x input on the last phase-0 block (same block index
        # as the previous step -> no DMA is issued); x is read from the cache.
        x_map = lambda b, ph, j: (b, 0, (1 - ph) * j + ph * (n_tiles - 1))
    else:
        x_map = lambda b, ph, j: (b, 0, j)          # re-stream x for phase 1

    scratch = [
        pltpu.VMEM((C_pad, C_pad), jnp.float32),    # attn accumulator / softmax
        pltpu.VMEM((C_pad, C_pad), jnp.bfloat16),   # cached bf16 gamma*attn_sm
    ]
    if cache_x:
        scratch.append(pltpu.VMEM((n_tiles, C_pad, tN), jnp.bfloat16))  # bf16 x cache

    kernel = functools.partial(_cam_kernel, c_actual=C, cache_x=cache_x)

    out = pl.pallas_call(
        kernel,
        out_shape=jax.ShapeDtypeStruct((B, C_pad, N_pad), x.dtype),
        grid=(B, 2, n_tiles),
        in_specs=[
            pl.BlockSpec(memory_space=pltpu.MemorySpace.SMEM),         # gamma
            pl.BlockSpec((1, C_pad, tN), x_map),                       # x tiles
        ],
        # Phase 0 parks on block (b,0,0) which is never written and never
        # flushed before phase 1 j=0 fully writes it; phase 1 writes real tiles.
        out_specs=pl.BlockSpec((1, C_pad, tN), lambda b, ph, j: (b, 0, ph * j)),
        scratch_shapes=scratch,
        compiler_params=pltpu.CompilerParams(
            dimension_semantics=("parallel", "arbitrary", "arbitrary"),
            vmem_limit_bytes=vmem_limit),
    )(gamma, xp)

    if (C_pad, N_pad) != (C, N):
        out = out[:, :C, :N]
    return out


def cam_reference(x, gamma):
    """Pure-JAX reference of the PyTorch forward, mirroring the kernel's
    precision policy (bf16 MXU operands / residual, f32 accumulation,
    gamma folded into the bf16 attention)."""
    xb = x.astype(jnp.bfloat16)
    attn = lax.dot_general(xb, xb, (((2,), (2,)), ((0,), (0,))),
                           preferred_element_type=jnp.float32)            # (B, C, C)
    energy = jnp.max(attn, axis=-1, keepdims=True) - attn
    attn_sm = jax.nn.softmax(energy, axis=1)                              # torch dim=1
    attn_g = (attn_sm * gamma[0]).astype(jnp.bfloat16)
    out = jnp.einsum("bij,bjn->bin", attn_g, xb,
                     preferred_element_type=jnp.float32)
    return (out + xb.astype(jnp.float32)).astype(x.dtype)


if __name__ == "__main__":
    key = jax.random.PRNGKey(0)

    # PyTorch initializes gamma to zero; use a nonzero value so the attention
    # path is actually exercised numerically.
    gamma = jnp.array([0.5], dtype=jnp.float32)

    # Tolerance rationale: kernel and reference share the bf16 policy, but the
    # tile-wise f32 accumulation of attn can flip a few bf16 roundings of the
    # (often near-one-hot) attention entries, giving ~1e-2 absolute deltas.
    TOL = dict(atol=2.5e-2, rtol=2.5e-2)

    # Test 1: small module-consistent shape (exercises C/N padding + masking).
    B, C, N = 2, 4, 16
    x1 = jax.random.normal(key, (B, C, N), dtype=jnp.float32)
    out1 = jax.block_until_ready(cam_forward(x1, gamma))
    ref1 = cam_reference(x1, gamma)
    assert out1.shape == (B, C, N)
    assert jnp.allclose(out1, ref1, **TOL), (
        f"test1 mismatch: max abs err {jnp.max(jnp.abs(out1 - ref1))}")

    # Test 2: multi-N-tile path with the VMEM x-cache (x read from HBM once).
    k2, k3 = jax.random.split(key)
    x2 = jax.random.normal(k2, (2, 16, 384), dtype=jnp.float32)
    out2 = jax.block_until_ready(cam_forward(x2, gamma, n_tile=128))
    ref2 = cam_reference(x2, gamma)
    assert out2.shape == x2.shape
    assert jnp.allclose(out2, ref2, **TOL), (
        f"test2 mismatch: max abs err {jnp.max(jnp.abs(out2 - ref2))}")

    # Test 3: multi-N-tile path with the cache disabled (HBM re-streaming fallback).
    x3 = jax.random.normal(k3, (1, 32, 512), dtype=jnp.float32)
    out3 = jax.block_until_ready(cam_forward(x3, gamma, n_tile=256, cache_x=False))
    ref3 = cam_reference(x3, gamma)
    assert out3.shape == x3.shape
    assert jnp.allclose(out3, ref3, **TOL), (
        f"test3 mismatch: max abs err {jnp.max(jnp.abs(out3 - ref3))}")

    print("KERNEL_OK")
</pallas_src>

<mosaic_0001>
module attributes {stable_mosaic.version = 11 : i64} {
  func.func @_cam_kernel(%arg0: i32, %arg1: i32, %arg2: i32, %arg3: memref<1xf32, #tpu.memory_space<smem>>, %arg4: memref<1x16x128xf32, #tpu.memory_space<vmem>>, %arg5: memref<1x16x128xf32, #tpu.memory_space<vmem>>, %arg6: memref<16x16xf32, #tpu.memory_space<vmem>>, %arg7: memref<16x16xbf16, #tpu.memory_space<vmem>>, %arg8: memref<1x16x128xbf16, #tpu.memory_space<vmem>>) attributes {dimension_semantics = [#tpu.dimension_semantics<parallel>, #tpu.dimension_semantics<arbitrary>, #tpu.dimension_semantics<arbitrary>], iteration_bounds = array<i64: 2, 2, 1>, scalar_prefetch = 0 : i64, scratch_operands = 3 : i64, tpu.core_type = #tpu.core_type<tc>, window_params = [{transform_indices = @transform_0, window_bounds = array<i64: 1>}, {transform_indices = @transform_1, window_bounds = array<i64: 1, 16, 128>}, {transform_indices = @transform_2, window_bounds = array<i64: 1, 16, 128>}]} {
    %c0_i32 = arith.constant 0 : i32
    %0 = arith.cmpi eq, %arg1, %c0_i32 : i32
    %1 = arith.extui %0 : i1 to i32
    %c0_i32_0 = arith.constant 0 : i32
    %2 = arith.cmpi ne, %1, %c0_i32_0 : i32
    scf.if %2 {
      %c0_i32_2 = arith.constant 0 : i32
      %6 = arith.cmpi eq, %arg2, %c0_i32_2 : i32
      %7 = arith.extui %6 : i1 to i32
      %c0_i32_3 = arith.constant 0 : i32
      %8 = arith.cmpi ne, %7, %c0_i32_3 : i32
      scf.if %8 {
        %cst_14 = arith.constant 0.000000e+00 : f32
        %23 = vector.broadcast %cst_14 : f32 to vector<16x16xf32>
        %c0_15 = arith.constant 0 : index
        %c0_16 = arith.constant 0 : index
        %24 = vector.load %arg6[%c0_15, %c0_16] : memref<16x16xf32, #tpu.memory_space<vmem>>, vector<16x16xf32>
        tpu.vector_store %arg6[%c0_15, %c0_16], %23 {strides = array<i32>} : memref<16x16xf32, #tpu.memory_space<vmem>>, vector<16x16xf32>,
      } else {
      }
      %c0 = arith.constant 0 : index
      %c0_4 = arith.constant 0 : index
      %c0_5 = arith.constant 0 : index
      %9 = vector.load %arg4[%c0, %c0_4, %c0_5] : memref<1x16x128xf32, #tpu.memory_space<vmem>>, vector<1x16x128xf32>
      %10 = vector.shape_cast %9 : vector<1x16x128xf32> to vector<16x128xf32>
      %11 = arith.truncf %10 : vector<16x128xf32> to vector<16x128xbf16>
      %c0_6 = arith.constant 0 : index
      %c0_7 = arith.constant 0 : index
      %12 = vector.load %arg6[%c0_6, %c0_7] : memref<16x16xf32, #tpu.memory_space<vmem>>, vector<16x16xf32>
      %cst = arith.constant dense<0.000000e+00> : vector<16x16xf32>
      %13 = tpu.matmul %11, %11, %cst {dimension_numbers = #tpu.dot_dimension_numbers<[1], [1], [0], [0], [0, 0, 1, 0], [], []>} : vector<16x128xbf16>, vector<16x128xbf16>, vector<16x16xf32> -> vector<16x16xf32>
      %14 = arith.addf %12, %13 : vector<16x16xf32>
      %c0_8 = arith.constant 0 : index
      %c0_9 = arith.constant 0 : index
      %15 = vector.load %arg6[%c0_8, %c0_9] : memref<16x16xf32, #tpu.memory_space<vmem>>, vector<16x16xf32>
      tpu.vector_store %arg6[%c0_8, %c0_9], %14 {strides = array<i32>} : memref<16x16xf32, #tpu.memory_space<vmem>>, vector<16x16xf32>,
      %16 = arith.index_cast %arg2 : i32 to index
      %c0_10 = arith.constant 0 : index
      %c0_11 = arith.constant 0 : index
      %17 = vector.load %arg8[%16, %c0_10, %c0_11] : memref<1x16x128xbf16, #tpu.memory_space<vmem>>, vector<1x16x128xbf16>
      %18 = vector.shape_cast %17 : vector<1x16x128xbf16> to vector<16x128xbf16>
      %19 = vector.shape_cast %11 : vector<16x128xbf16> to vector<1x16x128xbf16>
      tpu.vector_store %arg8[%16, %c0_10, %c0_11], %19 {strides = array<i32>} : memref<1x16x128xbf16, #tpu.memory_space<vmem>>, vector<1x16x128xbf16>,
      %c0_i32_12 = arith.constant 0 : i32
      %20 = arith.cmpi eq, %arg2, %c0_i32_12 : i32
      %21 = arith.extui %20 : i1 to i32
      %c0_i32_13 = arith.constant 0 : i32
      %22 = arith.cmpi ne, %21, %c0_i32_13 : i32
      scf.if %22 {
        %c0_14 = arith.constant 0 : index
        %c0_15 = arith.constant 0 : index
        %23 = vector.load %arg6[%c0_14, %c0_15] : memref<16x16xf32, #tpu.memory_space<vmem>>, vector<16x16xf32>
        %cst_16 = arith.constant dense<0xFF800000> : vector<16xf32>
        %24 = vector.multi_reduction <maximumf>, %23, %cst_16 [1] : vector<16x16xf32> to vector<16xf32>
        %25 = vector.shape_cast %24 : vector<16xf32> to vector<16x1xf32>
        %26 = vector.broadcast %25 : vector<16x1xf32> to vector<16x16xf32>
        %27 = arith.subf %26, %23 : vector<16x16xf32>
        %28 = tpu.iota {dimensions = array<i32: 0>} : vector<16x16xi32>
        %c4_i32 = arith.constant 4 : i32
        %29 = vector.broadcast %c4_i32 : i32 to vector<16x16xi32>
        %30 = arith.cmpi slt, %28, %29 : vector<16x16xi32>
        %cst_17 = arith.constant -1.000000e+30 : f32
        %31 = vector.broadcast %cst_17 : f32 to vector<16x16xf32>
        %32 = arith.select %30, %27, %31 : vector<16x16xi1>, vector<16x16xf32>
        %cst_18 = arith.constant dense<0xFF800000> : vector<16xf32>
        %33 = vector.multi_reduction <maximumf>, %32, %cst_18 [0] : vector<16x16xf32> to vector<16xf32>
        %34 = vector.shape_cast %33 : vector<16xf32> to vector<1x16xf32>
        %35 = vector.broadcast %34 : vector<1x16xf32> to vector<16x16xf32>
        %36 = arith.subf %32, %35 : vector<16x16xf32>
        %37 = math.exp %36 : vector<16x16xf32>
        %cst_19 = arith.constant dense<0.000000e+00> : vector<16xf32>
        %38 = vector.multi_reduction <add>, %37, %cst_19 [0] : vector<16x16xf32> to vector<16xf32>
        %39 = vector.shape_cast %38 : vector<16xf32> to vector<1x16xf32>
        %40 = vector.broadcast %39 : vector<1x16xf32> to vector<16x16xf32>
        %41 = arith.divf %37, %40 : vector<16x16xf32>
        %c0_20 = arith.constant 0 : index
        %42 = memref.load %arg3[%c0_20] : memref<1xf32, #tpu.memory_space<smem>>
        %43 = vector.broadcast %42 : f32 to vector<16x16xf32>
        %44 = arith.mulf %41, %43 : vector<16x16xf32>
        %45 = arith.truncf %44 : vector<16x16xf32> to vector<16x16xbf16>
        %c0_21 = arith.constant 0 : index
        %c0_22 = arith.constant 0 : index
        %46 = vector.load %arg7[%c0_21, %c0_22] : memref<16x16xbf16, #tpu.memory_space<vmem>>, vector<16x16xbf16>
        tpu.vector_store %arg7[%c0_21, %c0_22], %45 {strides = array<i32>} : memref<16x16xbf16, #tpu.memory_space<vmem>>, vector<16x16xbf16>,
      } else {
      }
    } else {
    }
    %c1_i32 = arith.constant 1 : i32
    %3 = arith.cmpi eq, %arg1, %c1_i32 : i32
    %4 = arith.extui %3 : i1 to i32
    %c0_i32_1 = arith.constant 0 : i32
    %5 = arith.cmpi ne, %4, %c0_i32_1 : i32
    scf.if %5 {
      %6 = arith.index_cast %arg2 : i32 to index
      %c0 = arith.constant 0 : index
      %c0_2 = arith.constant 0 : index
      %7 = vector.load %arg8[%6, %c0, %c0_2] : memref<1x16x128xbf16, #tpu.memory_space<vmem>>, vector<1x16x128xbf16>
      %8 = vector.shape_cast %7 : vector<1x16x128xbf16> to vector<16x128xbf16>
      %c0_3 = arith.constant 0 : index
      %c0_4 = arith.constant 0 : index
      %9 = vector.load %arg7[%c0_3, %c0_4] : memref<16x16xbf16, #tpu.memory_space<vmem>>, vector<16x16xbf16>
      %cst = arith.constant dense<0.000000e+00> : vector<16x128xf32>
      %10 = tpu.matmul %9, %8, %cst {dimension_numbers = #tpu.dot_dimension_numbers<[1], [0], [0], [1], [0, 0, 1, 1], [], []>} : vector<16x16xbf16>, vector<16x128xbf16>, vector<16x128xf32> -> vector<16x128xf32>
      %11 = arith.extf %8 : vector<16x128xbf16> to vector<16x128xf32>
      %12 = arith.addf %10, %11 : vector<16x128xf32>
      %c0_5 = arith.constant 0 : index
      %c0_6 = arith.constant 0 : index
      %c0_7 = arith.constant 0 : index
      %13 = vector.load %arg5[%c0_5, %c0_6, %c0_7] : memref<1x16x128xf32, #tpu.memory_space<vmem>>, vector<1x16x128xf32>
      %14 = vector.shape_cast %13 : vector<1x16x128xf32> to vector<16x128xf32>
      %15 = vector.shape_cast %12 : vector<16x128xf32> to vector<1x16x128xf32>
      tpu.vector_store %arg5[%c0_5, %c0_6, %c0_7], %15 {strides = array<i32>} : memref<1x16x128xf32, #tpu.memory_space<vmem>>, vector<1x16x128xf32>,
    } else {
    }
    return
  }
  func.func @transform_0(%arg0: i32, %arg1: i32, %arg2: i32) -> i32 {
    %c0_i32 = arith.constant 0 : i32
    %c0_i32_0 = arith.constant 0 : i32
    return %c0_i32 : i32
  }
  func.func @transform_1(%arg0: i32, %arg1: i32, %arg2: i32) -> (i32, i32, i32) {
    %c1_i32 = arith.constant 1 : i32
    %0 = arith.subi %c1_i32, %arg1 : i32
    %1 = arith.muli %0, %arg2 : i32
    %c0_i32 = arith.constant 0 : i32
    %2 = arith.muli %arg1, %c0_i32 : i32
    %3 = arith.addi %1, %2 : i32
    %c0_i32_0 = arith.constant 0 : i32
    %c0_i32_1 = arith.constant 0 : i32
    return %arg0, %c0_i32_0, %3 : i32, i32, i32
  }
  func.func @transform_2(%arg0: i32, %arg1: i32, %arg2: i32) -> (i32, i32, i32) {
    %0 = arith.muli %arg1, %arg2 : i32
    %c0_i32 = arith.constant 0 : i32
    %c0_i32_0 = arith.constant 0 : i32
    return %arg0, %c0_i32, %0 : i32, i32, i32
  }
}

</mosaic_0001>

<llo_original>
// kernel: tpu_custom_call.1
$region0: #{tpu_custom_call.1}
  #allocation0 [shape = 'u32[]', space=smem, size = 0x4, offset = 0x4, fixed_abs, tag = 'smem constant byte address 0x4 - core index']
  #allocation1 [shape = 'u32[144,128]{1,0:T(1,128)}', space=vmem, size = 0x12000, scoped, tag = 'internal scratch']
  #allocation2 [shape = 'f32[16,16]{1,0:T(8,128)}', space=vmem, size = 0x2000, scoped, tag = 'scratch operand']
  #allocation3 [shape = 'bf16[16,16]{1,0:T(16,128)(2,1)}', space=vmem, size = 0x1000, scoped, tag = 'scratch operand']
  #allocation4 [shape = 'bf16[1,16,128]{2,1,0:T(16,128)(2,1)}', space=vmem, size = 0x1000, scoped, tag = 'scratch operand']
  #allocation5 [shape = 'f32[1]{0:T(128)S(6)}', space=smem, size = 0x200, scoped, tag = 'scoped memory for tpu_custom_call.1']
  %s0 = inlined_call_operand.<no memory space> [shape: f32[1], index: 0, kind: input, shape index: {}]
  %s1 = inlined_call_operand.hbm [shape: f32[2,16,128], index: 1, kind: input, shape index: {}]
  %s2 = inlined_call_operand.hbm [shape: f32[2,16,128], index: 2, kind: output, shape index: {}]
  %s3 = sld [smem:[#allocation0]]
  $region61: #{tpu_custom_call.1} parent=0
    _
  %s5 = ssub.s32 1, %s3
  %s6 = scalar_select 0, %s5, %s3
  %7 = sst [smem:[#allocation5]] %s0
  $region1: #{tpu_custom_call.1} parent=0
    #allocation6 [shape = 'u8[16384]{0}', space=vmem, size = 0x4000, scoped, tag = 'input window, operand 1']
    #allocation7 [shape = 's32[2]{0}', space=sflag, size = 0x8, scoped, tag = 'scoped memory for tpu_custom_call.1']
    #allocation8 [shape = 's32[2]{0}', space=sflag, size = 0x8, scoped, tag = 'scoped memory for tpu_custom_call.1']
    #allocation9 [shape = 'u8[16384]{0}', space=vmem, size = 0x4000, scoped, tag = 'output window, operand 0']
    %8 = vsyncpa [#allocation7], 0
    %s9 = scalar_lea.sflag [#allocation7], 1
    %10 = vsyncpa %s9, 0
    %11 = vsyncpa [#allocation8], 0
    %s12 = scalar_lea.sflag [#allocation8], 1
    %13 = vsyncpa %s12, 0
    loop: start=0, step=1, limit=6
    $region2: #{tpu_custom_call.1} parent=1 // loop_pre_header
      _
    $region3: #{tpu_custom_call.1} parent=1 // loop_header
      %s15 = sphi 0, %s19
      %p16 = scmp.ge.s32.totalorder %s15, 6
      %s22 = sphi 0, %s41
      %s23 = sphi 0, %s37
      %s24 = sphi 0, %s33
      %s25 = sphi 0, %s22
      %s26 = sphi 0, %s23
      %s27 = sphi 0, %s24
      %s28 = sphi 0, %s25
      %s29 = sphi 0, %s26
      %s30 = sphi 0, %s27
      %s42 = sphi 0, %s42
      %s44 = sphi 0, %s42
      %s45 = sphi 0, %s44
      %s59 = sphi 0, %s45
      %s71 = sphi 0, %s73
      %s74 = sphi 0, %s71
      %s75 = sphi 0, %s74
      %s91 = sphi 0, %s75
      %s101 = sphi 0, %s103
      %s104 = sphi 0, %s101
      %s105 = sphi 0, %s104
      %s121 = sphi 0, %s105
    $region4: #{tpu_custom_call.1} parent=1 // loop_header_branch
      %18 = sbr.rel (%p16) target = $region8
    $region5: #{tpu_custom_call.1} parent=1 // loop_body
      %s20 = ssub.s32 %s15, 1
      %s21 = ssub.s32 %s15, 2
      %s31 = sadd.s32 1, %s24
      %p32 = scmp.ge.s32.totalorder %s31, 1
      %s33 = scalar_select %p32, 0, %s31
      %s34 = sadd.s32 1, %s23
      %s35 = scalar_select %p32, %s34, %s23
      %p36 = scmp.ge.s32.totalorder %s35, 2
      %s37 = scalar_select %p36, 0, %s35
      %s38 = sadd.s32 1, %s22
      %s39 = scalar_select %p36, %s38, %s22
      %p40 = scmp.ge.s32.totalorder %s39, 2
      %s41 = scalar_select %p40, 0, %s39
      %s43 = sadd.s32 %s42, 1
      %p46 = scmp.eq.s32.totalorder %s15, 3
      %p47 = scmp.ne.s32.totalorder %s42, %s44
      %p48 = scmp.eq.s32.totalorder %s15, 0
      %p49 = por %p47, %p48
      %p50 = scmp.ne.s32.totalorder %s42, %s44
      %p51 = scmp.eq.s32.totalorder %s20, 3
      %p52 = por %p50, %p51
      %p53 = scmp.ne.s32.totalorder %s44, %s45
      %p54 = scmp.eq.s32.totalorder %s20, 0
      %p55 = por %p53, %p54
      %p56 = scmp.ne.s32.totalorder %s44, %s45
      %p57 = scmp.eq.s32.totalorder %s21, 3
      %p58 = por %p56, %p57
      %p60 = scmp.ne.s32.totalorder %s45, %s59
      %p61 = scmp.eq.s32.totalorder %s21, 0
      %p62 = por %p60, %p61
      %s63 = ssub.s32 1, %s23
      %s64 = smul.u32 %s63, %s24
      %s65 = ssub.s32 1, %s37
      %s66 = smul.u32 %s65, %s33
      %s67 = ssub.s32 %s22, %s41
      %s68 = ssub.s32 %s64, %s66
      %s69 = sor.u32 %s67, %s68
      %p70 = scmp.eq.s32.totalorder %s69, 0
      %s72 = sadd.s32 %s71, 1
      %s73 = scalar_select %p70, %s71, %s72
      %p76 = pneg %p70
      %p77 = scmp.eq.s32.totalorder %s15, 3
      %p78 = por %p76, %p77
      %p79 = scmp.ne.s32.totalorder %s71, %s74
      %p80 = scmp.eq.s32.totalorder %s15, 0
      %p81 = por %p79, %p80
      %p82 = scmp.ne.s32.totalorder %s71, %s74
      %p83 = scmp.eq.s32.totalorder %s20, 3
      %p84 = por %p82, %p83
      %p85 = scmp.ne.s32.totalorder %s74, %s75
      %p86 = scmp.eq.s32.totalorder %s20, 0
      %p87 = por %p85, %p86
      %p88 = scmp.ne.s32.totalorder %s74, %s75
      %p89 = scmp.eq.s32.totalorder %s21, 3
      %p90 = por %p88, %p89
      %p92 = scmp.ne.s32.totalorder %s75, %s91
      %p93 = scmp.eq.s32.totalorder %s21, 0
      %p94 = por %p92, %p93
      %s95 = smul.u32 %s23, %s24
      %s96 = smul.u32 %s37, %s33
      %s97 = ssub.s32 %s22, %s41
      %s98 = ssub.s32 %s95, %s96
      %s99 = sor.u32 %s97, %s98
      %p100 = scmp.eq.s32.totalorder %s99, 0
      %s102 = sadd.s32 %s101, 1
      %s103 = scalar_select %p100, %s101, %s102
      %p106 = pneg %p100
      %p107 = scmp.eq.s32.totalorder %s15, 3
      %p108 = por %p106, %p107
      %p109 = scmp.ne.s32.totalorder %s101, %s104
      %p110 = scmp.eq.s32.totalorder %s15, 0
      %p111 = por %p109, %p110
      %p112 = scmp.ne.s32.totalorder %s101, %s104
      %p113 = scmp.eq.s32.totalorder %s20, 3
      %p114 = por %p112, %p113
      %p115 = scmp.ne.s32.totalorder %s104, %s105
      %p116 = scmp.eq.s32.totalorder %s20, 0
      %p117 = por %p115, %p116
      %p118 = scmp.ne.s32.totalorder %s104, %s105
      %p119 = scmp.eq.s32.totalorder %s21, 3
      %p120 = por %p118, %p119
      %p122 = scmp.ne.s32.totalorder %s105, %s121
      %p123 = scmp.eq.s32.totalorder %s21, 0
      %p124 = por %p122, %p123
      %p125 = scmp.le.s32.totalorder 1, %s15
      %p126 = scmp.lt.s32.totalorder %s15, 5
      %p127 = pnand %p125, %p126
      %p128 = pneg %p127
      // Predicated region
      $region9: #{tpu_custom_call.1} parent=5 // pred_check
        _
      $region10: #{tpu_custom_call.1} parent=5 // pred_check_branch
        %130 = sbr.rel (%p127) target = $region12
      $region11: #{tpu_custom_call.1} parent=5 // pred_region
        %s131 = ssub.s32 %s15, 1
        // Predicated region
        $region13: #{tpu_custom_call.1} parent=11 // pred_check
          %p132 = pneg %p55
        $region14: #{tpu_custom_call.1} parent=11 // pred_check_branch
          %134 = sbr.rel (%p132) target = $region16
        $region15: #{tpu_custom_call.1} parent=11 // pred_region
          _
        $region16: #{tpu_custom_call.1} parent=11 // pred_fallthru
          _
      $region12: #{tpu_custom_call.1} parent=5 // pred_fallthru
        _
      %p135 = scmp.lt.s32.totalorder %s15, 4
      // Predicated region
      $region17: #{tpu_custom_call.1} parent=5 // pred_check
        %p136 = pneg %p135
      $region18: #{tpu_custom_call.1} parent=5 // pred_check_branch
        %138 = sbr.rel (%p136) target = $region20
      $region19: #{tpu_custom_call.1} parent=5 // pred_region
        // Predicated region
        $region21: #{tpu_custom_call.1} parent=19 // pred_check
          %p139 = pneg %p81
        $region22: #{tpu_custom_call.1} parent=19 // pred_check_branch
          %141 = sbr.rel (%p139) target = $region24
        $region23: #{tpu_custom_call.1} parent=19 // pred_region
          %s142 = sand.u32 %s71, 1
          %s143 = scalar_lea.sflag [#allocation7], %s142
          %s144 = sand.u32 %s71, 1
          %s145 = smul.addr %s144, 16
          %s146 = scalar_lea.vmem [#allocation6], %s145
          %s147 = ssub.s32 1, %s23
          %s148 = smul.u32 %s147, %s24
          %s150 = ssub.s32 256, 256
          %151 = vsyncadd %s143, %s150
          %s152 = smul.addr %s22, 2
          %s153 = sadd.s32 %s148, %s152
          %s154 = smul.addr %s153, 128
          %s155 = scalar_lea.hbm %s1, %s154
          %s156 = sshll.u32 %s146, 4
          %s157 = int_to_ptr.vmem [resolvable:$true] %s156
          %162 = dma.hbm_to_vmem [thread:$0]  %s155, 256, %s157, %s143, 128, 128, 8
        $region24: #{tpu_custom_call.1} parent=19 // pred_fallthru
          _
      $region20: #{tpu_custom_call.1} parent=5 // pred_fallthru
        _
      %p163 = scmp.le.s32.totalorder 1, %s15
      %p164 = scmp.lt.s32.totalorder %s15, 5
      %p165 = pnand %p163, %p164
      %p166 = pneg %p165
      // Predicated region
      $region25: #{tpu_custom_call.1} parent=5 // pred_check
        _
      $region26: #{tpu_custom_call.1} parent=5 // pred_check_branch
        %168 = sbr.rel (%p165) target = $region28
      $region27: #{tpu_custom_call.1} parent=5 // pred_region
        %s169 = ssub.s32 %s15, 1
        %s170 = sand.u32 %s74, 1
        %s171 = scalar_lea.sflag [#allocation7], %s170
        %s172 = sand.u32 %s74, 1
        %s173 = smul.addr %s172, 16
        %s174 = scalar_lea.vmem [#allocation6], %s173
        // Predicated region
        $region29: #{tpu_custom_call.1} parent=27 // pred_check
          %p175 = pneg %p87
        $region30: #{tpu_custom_call.1} parent=27 // pred_check_branch
          %177 = sbr.rel (%p175) target = $region32
        $region31: #{tpu_custom_call.1} parent=27 // pred_region
          %178 = dma.done %s171, 256
        $region32: #{tpu_custom_call.1} parent=27 // pred_fallthru
          _
        %p179 = pneg %p55
        %p180 = pneg %p52
        %s181 = sand.u32 %s74, 1
        %s182 = scalar_lea.sflag [#allocation7], %s181
        %s183 = sand.u32 %s74, 1
        %s184 = smul.addr %s183, 16
        %s185 = scalar_lea.vmem [#allocation6], %s184
        %p186 = pneg %p87
        %p187 = pneg %p84
        %p188 = pneg %p117
        %p189 = pneg %p114
        %s190 = sand.u32 %s104, 1
        %s191 = scalar_lea.sflag [#allocation8], %s190
        %s192 = sand.u32 %s104, 1
        %s193 = smul.addr %s192, 16
        %s194 = scalar_lea.vmem [#allocation9], %s193
        %s195 = ssub.s32 1, %s26
        %s196 = smul.u32 %s195, %s27
        %s197 = smul.u32 %s26, %s27
        %p199 = scmp.eq.s32.totalorder %s26, 0
        // Predicated region
        $region33: #{tpu_custom_call.1} parent=27 // pred_check
          %p200 = pneg %p199
        $region34: #{tpu_custom_call.1} parent=27 // pred_check_branch
          %202 = sbr.rel (%p200) target = $region36
        $region35: #{tpu_custom_call.1} parent=27 // pred_region
          %p203 = scmp.eq.s32.totalorder %s27, 0
          // Predicated region
          $region37: #{tpu_custom_call.1} parent=35 // pred_check
            %p204 = pneg %p203
          $region38: #{tpu_custom_call.1} parent=35 // pred_check_branch
            %206 = sbr.rel (%p204) target = $region40
          $region39: #{tpu_custom_call.1} parent=35 // pred_region
            %vm207 = vcmask 130048
            %208 = vst.msk [vmem:[#allocation2] sm:$0xff] %vm207, 0.0
            %209 = vst.msk [vmem:[#allocation2 + $0x8] sm:$0xff] %vm207, 0.0
          $region40: #{tpu_custom_call.1} parent=35 // pred_fallthru
            _
          %v210 = vld [vmem:[%s174] sm:$0xff]
          %v211 = vld [vmem:[%s174 + $0x8] sm:$0xff]
          %v212 = vpack.c.bf16 %v211, %v210
          %v213 = vld [vmem:[#allocation2] sm:$0xff]
          %v214 = vld [vmem:[#allocation2 + $0x8] sm:$0xff]
          %215 = vmatprep.subr.bf16.mxu0 0
          %216 = vmatpush1.bf16.xpose.msra.mxu0 %v212
          %217 = vmatprep.subr.bf16.mxu0 0
          %218 = vmatpush1.bf16.xpose.msra.mxu0 0
          %219 = vmatprep.subr.bf16.mxu0 0
          %220 = vmatpush1.bf16.xpose.msra.mxu0 0
          %221 = vmatprep.subr.bf16.mxu0 0
          %222 = vmatpush1.bf16.xpose.msra.mxu0 0
          %223 = vmatprep.subr.bf16.mxu0 0
          %224 = vmatpush1.bf16.xpose.msra.mxu0 0
          %225 = vmatprep.subr.bf16.mxu0 0
          %226 = vmatpush1.bf16.xpose.msra.mxu0 0
          %227 = vmatprep.subr.bf16.mxu0 0
          %228 = vmatpush1.bf16.xpose.msra.mxu0 0
          %229 = vmatprep.subr.bf16.mxu0 0
          %230 = vmatpush1.bf16.xpose.msra.mxu0 0
          %231 = vmatprep.subr.bf16.mxu0 0
          %232 = vmatpush1.bf16.xpose.msra.mxu0 0
          %233 = vmatprep.subr.bf16.mxu0 0
          %234 = vmatpush1.bf16.xpose.msra.mxu0 0
          %235 = vmatprep.subr.bf16.mxu0 0
          %236 = vmatpush1.bf16.xpose.msra.mxu0 0
          %237 = vmatprep.subr.bf16.mxu0 0
          %238 = vmatpush1.bf16.xpose.msra.mxu0 0
          %239 = vmatprep.subr.bf16.mxu0 0
          %240 = vmatpush1.bf16.xpose.msra.mxu0 0
          %241 = vmatprep.subr.bf16.mxu0 0
          %242 = vmatpush1.bf16.xpose.msra.mxu0 0
          %243 = vmatprep.subr.bf16.mxu0 0
          %244 = vmatpush1.bf16.xpose.msra.mxu0 0
          %245 = vmatprep.subr.bf16.mxu0 0
          %246 = vmatpush1.bf16.xpose.msra.mxu0 0
          %247 = vmatprep.mubr.bf16.mxu0 0
          %248 = vmatmul.mubr.bf16.gmra.mrb[0].mxu0 %v212
          %v249 = vpop.f32.mrb[0].mxu0
          %v250 = vadd.f32 0.0, %v249
          %v251 = vpop.f32.mrb[0].mxu0
          %v252 = vpop.f32.mrb[0].mxu0
          %v253 = vadd.f32 0.0, %v252
          %v254 = vpop.f32.mrb[0].mxu0
          %255 = vdwg.mxu0
          %v256 = vadd.f32 %v213, %v250
          %v257 = vadd.f32 %v214, %v253
          %vm258 = vcmask 130048
          %259 = vst.msk [vmem:[#allocation2] sm:$0xff] %vm258, %v256
          %260 = vst.msk [vmem:[#allocation2 + $0x8] sm:$0xff] %vm258, %v257
          %s261 = smul.addr %s27, 8
          %s262 = scalar_lea.vmem [#allocation4], %s261
          %263 = vst [vmem:[%s262] sm:$0xff] %v212
          // Predicated region
          $region41: #{tpu_custom_call.1} parent=35 // pred_check
            %p264 = pneg %p203
          $region42: #{tpu_custom_call.1} parent=35 // pred_check_branch
            %266 = sbr.rel (%p264) target = $region44
          $region43: #{tpu_custom_call.1} parent=35 // pred_region
            %v267 = vld [vmem:[#allocation2] sm:$0xff]
            %v268 = vld [vmem:[#allocation2 + $0x8] sm:$0xff]
            %v269 = vsel %vm258, %v267, -inf
            %270 = vmax.xlane.f32.xlu0 %v269
            %v271 = vpop.xlane.xlu0 %270
            %v272 = vsel %vm258, %v268, -inf
            %273 = vmax.xlane.f32.xlu0 %v272
            %v274 = vpop.xlane.xlu0 %273
            %v275 = vsub.f32 %v271, %v267
            %v276 = vsub.f32 %v274, %v268
            %v277 = vlaneseq
            %v278 = vshrl.u32 %v277, 7
            %v279 = vadd.s32 %v278, 8
            %vm280 = vcmp.lt.s32.totalorder %v278, 4
            %vm281 = vcmp.lt.s32.totalorder %v279, 4
            %v282 = vsel %vm280, %v275, -1e+30
            %v283 = vsel %vm281, %v276, -1e+30
            %v284 = vsel %vm258, %v282, -inf
            %v285 = vsel %vm258, %v283, -inf
            %v286 = vmax.f32 %v284, %v285
            %v287 = vrot.slane %v286, 4
            %v288 = vmax.f32 %v286, %v287
            %v289 = vrot.slane %v288, 2
            %v290 = vmax.f32 %v288, %v289
            %v291 = vrot.slane %v290, 1
            %v292 = vmax.f32 %v290, %v291
            %v293 = vsub.f32 %v282, %v292
            %v294 = vsub.f32 %v283, %v292
            %v295 = vmul.f32 %v293, 1.442695
            %v296 = vpow.pop %v295
            %v297 = vmul.f32 %v294, 1.442695
            %v298 = vpow.pop %v297
            %v299 = vsel %vm258, %v296, 0.0
            %v300 = vsel %vm258, %v298, 0.0
            %v301 = vadd.f32 %v299, %v300
            %v302 = vrot.slane %v301, 4
            %v303 = vadd.f32 %v301, %v302
            %v304 = vrot.slane %v303, 2
            %v305 = vadd.f32 %v303, %v304
            %v306 = vrot.slane %v305, 1
            %v307 = vadd.f32 %v305, %v306
            %v308 = vrcp.pop %v307
            %v309 = vmul.f32 %v296, %v308
            %v310 = vmul.f32 %v298, %v308
            %s311 = sld [smem:[#allocation5]]
            %v312 = vstv %s311
            %v313 = vmul.f32 %v309, %v312
            %v314 = vmul.f32 %v310, %v312
            %v315 = vpack.c.bf16 %v314, %v313
            %316 = vst.msk [vmem:[#allocation3] sm:$0xff] %vm258, %v315
          $region44: #{tpu_custom_call.1} parent=35 // pred_fallthru
            _
        $region36: #{tpu_custom_call.1} parent=27 // pred_fallthru
          _
        %p317 = scmp.eq.s32.totalorder %s26, 1
        // Predicated region
        $region45: #{tpu_custom_call.1} parent=27 // pred_check
          %p318 = pneg %p317
        $region46: #{tpu_custom_call.1} parent=27 // pred_check_branch
          %320 = sbr.rel (%p318) target = $region48
        $region47: #{tpu_custom_call.1} parent=27 // pred_region
          %s321 = smul.addr %s27, 8
          %s322 = scalar_lea.vmem [#allocation4], %s321
          %v323 = vld [vmem:[%s322] sm:$0xff]
          %v324 = vld [vmem:[#allocation3] sm:$0xff]
          %v325 = vunpack.c.l.bf16 %v323
          %v326 = vunpack.c.h.bf16 %v323
          %vm327 = vcmask 130048
          %v329 = vsel %vm327, %v324, 0
          %331 = vmatprep.subr.bf16.mxu0 0
          %332 = vmatpush1.bf16.msra.mxu0 %v323
          %333 = vmatprep.subr.bf16.mxu0 0
          %334 = vmatpush1.bf16.msra.mxu0 0
          %335 = vmatprep.subr.bf16.mxu0 0
          %336 = vmatpush1.bf16.msra.mxu0 0
          %337 = vmatprep.subr.bf16.mxu0 0
          %338 = vmatpush1.bf16.msra.mxu0 0
          %339 = vmatprep.subr.bf16.mxu0 0
          %340 = vmatpush1.bf16.msra.mxu0 0
          %341 = vmatprep.subr.bf16.mxu0 0
          %342 = vmatpush1.bf16.msra.mxu0 0
          %343 = vmatprep.subr.bf16.mxu0 0
          %344 = vmatpush1.bf16.msra.mxu0 0
          %345 = vmatprep.subr.bf16.mxu0 0
          %346 = vmatpush1.bf16.msra.mxu0 0
          %347 = vmatprep.subr.bf16.mxu0 0
          %348 = vmatpush1.bf16.msra.mxu0 0
          %349 = vmatprep.subr.bf16.mxu0 0
          %350 = vmatpush1.bf16.msra.mxu0 0
          %351 = vmatprep.subr.bf16.mxu0 0
          %352 = vmatpush1.bf16.msra.mxu0 0
          %353 = vmatprep.subr.bf16.mxu0 0
          %354 = vmatpush1.bf16.msra.mxu0 0
          %355 = vmatprep.subr.bf16.mxu0 0
          %356 = vmatpush1.bf16.msra.mxu0 0
          %357 = vmatprep.subr.bf16.mxu0 0
          %358 = vmatpush1.bf16.msra.mxu0 0
          %359 = vmatprep.subr.bf16.mxu0 0
          %360 = vmatpush1.bf16.msra.mxu0 0
          %361 = vmatprep.subr.bf16.mxu0 0
          %362 = vmatpush1.bf16.msra.mxu0 0
          %363 = vmatprep.mubr.bf16.mxu0 0
          %364 = vmatmul.mubr.bf16.gmra.mrb[0].mxu0 %v329
          %v365 = vpop.f32.mrb[0].mxu0
          %v366 = vadd.f32 %v325, %v365
          %v367 = vpop.f32.mrb[0].mxu0
          %v368 = vpop.f32.mrb[0].mxu0
          %v369 = vadd.f32 %v326, %v368
          %v370 = vpop.f32.mrb[0].mxu0
          %371 = vdwg.mxu0
          %372 = vst [vmem:[%s194] sm:$0xff] %v366
          %373 = vst [vmem:[%s194 + $0x8] sm:$0xff] %v369
        $region48: #{tpu_custom_call.1} parent=27 // pred_fallthru
          _
        %s374 = sand.u32 %s104, 1
        %s375 = scalar_lea.sflag [#allocation8], %s374
        %s376 = sand.u32 %s104, 1
        %s377 = smul.addr %s376, 16
        %s378 = scalar_lea.vmem [#allocation9], %s377
        // Predicated region
        $region49: #{tpu_custom_call.1} parent=27 // pred_check
          %p379 = pneg %p114
        $region50: #{tpu_custom_call.1} parent=27 // pred_check_branch
          %381 = sbr.rel (%p379) target = $region52
        $region51: #{tpu_custom_call.1} parent=27 // pred_region
          %s382 = smul.u32 %s26, %s27
          %s384 = ssub.s32 256, 256
          %385 = vsyncadd %s375, %s384
          %s386 = smul.addr %s25, 2
          %s387 = sadd.s32 %s382, %s386
          %s388 = smul.addr %s387, 128
          %s389 = scalar_lea.hbm %s2, %s388
          %s390 = sshll.u32 %s378, 4
          %s391 = int_to_ptr.vmem [resolvable:$true] %s390
          %396 = dma.vmem_to_hbm [thread:$0]  %s391, 256, %s389, %s375, 128, 128, 8
        $region52: #{tpu_custom_call.1} parent=27 // pred_fallthru
          _
      $region28: #{tpu_custom_call.1} parent=5 // pred_fallthru
        _
      %p397 = scmp.le.s32.totalorder 2, %s15
      // Predicated region
      $region53: #{tpu_custom_call.1} parent=5 // pred_check
        %p398 = pneg %p397
      $region54: #{tpu_custom_call.1} parent=5 // pred_check_branch
        %400 = sbr.rel (%p398) target = $region56
      $region55: #{tpu_custom_call.1} parent=5 // pred_region
        %s401 = ssub.s32 %s15, 2
        // Predicated region
        $region57: #{tpu_custom_call.1} parent=55 // pred_check
          %p402 = pneg %p120
        $region58: #{tpu_custom_call.1} parent=55 // pred_check_branch
          %404 = sbr.rel (%p402) target = $region60
        $region59: #{tpu_custom_call.1} parent=55 // pred_region
          %s405 = sand.u32 %s105, 1
          %s406 = scalar_lea.sflag [#allocation8], %s405
          %s407 = sand.u32 %s105, 1
          %s408 = smul.addr %s407, 16
          %s409 = scalar_lea.vmem [#allocation9], %s408
          %410 = dma.done %s406, 256
        $region60: #{tpu_custom_call.1} parent=55 // pred_fallthru
          _
      $region56: #{tpu_custom_call.1} parent=5 // pred_fallthru
        _
    $region6: #{tpu_custom_call.1} parent=1 // loop_footer
      %s19 = sadd.s32 1, %s15
    $region7: #{tpu_custom_call.1} parent=1 // loop_footer_branch
      %14 = sbr.rel target = $region3
    $region8: #{tpu_custom_call.1} parent=1 // loop_exit
      _
    %411 = vsyncpa [#allocation7], 1
    %s412 = scalar_lea.sflag [#allocation7], 1
    %413 = vsyncpa %s412, 1
    %414 = vsyncpa [#allocation8], 1
    %s415 = scalar_lea.sflag [#allocation8], 1
    %416 = vsyncpa %s415, 1

</llo_original>
